<compile_context>
chip_gen: v7x
topology: tpu7x:2x2x1
jax: 0.10.0
libtpu: 0.0.40
codegen_flags: <defaults>
</compile_context>

<pallas_src>
import functools
import re

import jax
import jax.numpy as jnp
from jax import lax
from jax.experimental import pallas as pl
from jax.experimental.pallas import tpu as pltpu


def _apply_activation(z, activ: str):
    """Mirror of get_activation() applied element-wise on a VMEM tile."""
    if activ == "relu":
        return jnp.maximum(z, 0.0)
    if activ == "tanh":
        return jnp.tanh(z)
    if activ == "sigmoid":
        return jax.nn.sigmoid(z)
    if activ == "identity":
        return z
    m = re.match(r"^htanh_(\d{4})$", activ)
    if m:
        bound = int(m.group(1)) / 1000.0
        return jnp.clip(z, -bound, bound)
    raise NotImplementedError(activ)


def _lbad_kernel(x_ref, w_ref, scale_ref, shift_ref, o_ref, *scratch,
                 activ, drop_rate, training, base_seed):
    # f32 output: accumulate directly into the resident output tile (no scratch,
    # saves tm*tn*4 bytes of VMEM + a tile copy). Otherwise scratch[0] is f32 acc.
    acc_ref = scratch[0] if scratch else o_ref
    k = pl.program_id(2)

    @pl.when(k == 0)
    def _():
        acc_ref[...] = jnp.zeros_like(acc_ref)

    # MXU matmul: x tile (tm, tk) . W tile (tn, tk), contracting the K (last)
    # dim of both -> (tm, tn). Weight is consumed in its native (O, K) layout.
    acc_ref[...] += lax.dot_general(
        x_ref[...], w_ref[...],
        dimension_numbers=(((1,), (1,)), ((), ())),
        preferred_element_type=jnp.float32)

    @pl.when(k == pl.num_programs(2) - 1)
    def _():
        # Fused epilogue: (bias + folded BN) -> activation -> dropout -> store.
        z = acc_ref[...] * scale_ref[...] + shift_ref[...]
        z = _apply_activation(z, activ)
        if drop_rate > 0.0 and training:
            # TODO(synk): mask depends on tile geometry and a fixed seed; callers
            # must vary dropout_seed per training step for fresh masks.
            tile_id = pl.program_id(0) * pl.num_programs(1) + pl.program_id(1)
            pltpu.prng_seed(base_seed + tile_id)
            bits = pltpu.bitcast(pltpu.prng_random_bits(z.shape), jnp.uint32)
            # Integer-threshold compare on raw bits: P(keep) = 1 - drop_rate.
            thresh = jnp.uint32(min(int(round(drop_rate * (2.0 ** 32))), 2 ** 32 - 1))
            keep = bits >= thresh
            z = jnp.where(keep, z * (1.0 / (1.0 - drop_rate)), 0.0)
        o_ref[...] = z.astype(o_ref.dtype)


def _round_up(x: int, m: int) -> int:
    return ((x + m - 1) // m) * m


def _pick_tile(dim: int, unit: int, cap: int) -> int:
    """Tile is a multiple of `unit`, <= cap; ragged dims get padded, never a
    degenerate (8-wide) or full-extent fallback. Minimizes padded work, ties
    broken toward the larger tile."""
    padded = _round_up(dim, unit)
    if padded <= cap:
        return padded
    best_work, best_t = None, None
    for t in (cap, cap // 2, cap // 4):
        if t < unit:
            continue
        work = _round_up(dim, t)
        if best_work is None or work < best_work:
            best_work, best_t = work, t
    return best_t


def lbad_forward(x, weight, bias, *,
                 activ: str = "relu",
                 drop_rate: float = 0.0,
                 training: bool = False,
                 dropout_seed: int = 0,
                 bn=None,            # optional (gamma, beta, running_mean, running_var)
                 bn_eps: float = 1e-5,
                 compute_dtype=jnp.bfloat16):
    """Pallas equivalent of LBAD.forward(x) for a single Linear layer."""
    N, K = x.shape
    O, K2 = weight.shape
    assert K == K2, (x.shape, weight.shape)
    out_dtype = x.dtype

    if bn is not None and training:
        raise NotImplementedError(
            "TODO(synk): training-mode BatchNorm1d (batch statistics) is not "
            "implemented in-kernel; only inference-mode BN is folded.")

    # Fold bias (+ inference-mode BN) into per-feature scale/shift (f32).
    if bn is not None:
        gamma, beta, mean, var = bn
        scale = gamma.astype(jnp.float32) / jnp.sqrt(var.astype(jnp.float32) + bn_eps)
        shift = (bias.astype(jnp.float32) - mean.astype(jnp.float32)) * scale + beta.astype(jnp.float32)
    else:
        scale = jnp.ones((O,), jnp.float32)
        shift = bias.astype(jnp.float32)

    # Tile selection: lane-dense, favor tm/tn over tk (tk capped at 512).
    tm = _pick_tile(N, 8, 512)
    tn = _pick_tile(O, 128, 512)
    tk = _pick_tile(K, 128, 512)
    Np, Op, Kp = _round_up(N, tm), _round_up(O, tn), _round_up(K, tk)

    # Cast MXU operands to the compute dtype (bf16 by default) and zero-pad
    # ragged dims up to tile multiples (zero padding along K is exact).
    xc = x.astype(compute_dtype)
    wc = weight.astype(compute_dtype)
    if (Np, Kp) != (N, K):
        xc = jnp.pad(xc, ((0, Np - N), (0, Kp - K)))
    if (Op, Kp) != (O, K):
        wc = jnp.pad(wc, ((0, Op - O), (0, Kp - K)))
    scale2 = scale.reshape(1, O)
    shift2 = shift.reshape(1, O)
    if Op != O:
        scale2 = jnp.pad(scale2, ((0, 0), (0, Op - O)))
        shift2 = jnp.pad(shift2, ((0, 0), (0, Op - O)))

    grid = (Np // tm, Op // tn, Kp // tk)
    out_is_f32 = jnp.dtype(out_dtype) == jnp.dtype(jnp.float32)

    # VMEM budget = double-buffered tiles + accumulator + headroom (do not
    # request the whole physical VMEM, esp. on v7x's 64 MiB).
    csz = jnp.dtype(compute_dtype).itemsize
    osz = jnp.dtype(out_dtype).itemsize
    vmem_need = (2 * tm * tk * csz            # x tiles
                 + 2 * tn * tk * csz          # W tiles
                 + 2 * tm * tn * osz          # output tiles
                 + 4 * 2 * tn * 4             # scale/shift tiles
                 + (0 if out_is_f32 else tm * tn * 4))
    vmem_limit = min(max(2 * vmem_need + (2 << 20), 16 << 20), 48 << 20)

    trans = Np * Op if activ in ("tanh", "sigmoid") else 0
    cost = pl.CostEstimate(
        flops=2 * Np * Op * Kp,
        transcendentals=trans,
        bytes_accessed=Np * Kp * csz + Op * Kp * csz + Np * Op * osz)

    kernel = functools.partial(
        _lbad_kernel,
        activ=activ,
        drop_rate=float(drop_rate),
        training=bool(training),
        base_seed=int(dropout_seed),
    )

    out = pl.pallas_call(
        kernel,
        out_shape=jax.ShapeDtypeStruct((Np, Op), out_dtype),
        grid_spec=pltpu.PrefetchScalarGridSpec(
            num_scalar_prefetch=0,
            grid=grid,
            in_specs=[
                pl.BlockSpec((tm, tk), lambda i, j, k: (i, k)),   # x tile
                pl.BlockSpec((tn, tk), lambda i, j, k: (j, k)),   # W tile (native (O, K))
                pl.BlockSpec((1, tn), lambda i, j, k: (0, j)),    # scale
                pl.BlockSpec((1, tn), lambda i, j, k: (0, j)),    # shift
            ],
            out_specs=pl.BlockSpec((tm, tn), lambda i, j, k: (i, j)),
            scratch_shapes=([] if out_is_f32
                            else [pltpu.VMEM((tm, tn), jnp.float32)]),
        ),
        compiler_params=pltpu.CompilerParams(
            dimension_semantics=("parallel", "parallel", "arbitrary"),
            vmem_limit_bytes=int(vmem_limit),
        ),
        cost_estimate=cost,
    )(xc, wc, scale2, shift2)

    if (Np, Op) != (N, O):
        out = out[:N, :O]
    return out


if __name__ == "__main__":
    key = jax.random.PRNGKey(0)
    kx, kw, kb = jax.random.split(key, 3)

    # Small shapes consistent with a stacking-MLP layer: batch=16, in=64, out=128.
    batch, in_features, out_features = 16, 64, 128
    x = jax.random.normal(kx, (batch, in_features), dtype=jnp.float32)
    bound = 1.0 / (in_features ** 0.5)  # torch nn.Linear default init range
    weight = jax.random.uniform(kw, (out_features, in_features), jnp.float32, -bound, bound)
    bias = jax.random.uniform(kb, (out_features,), jnp.float32, -bound, bound)

    # Default LBAD config: relu, no BN, drop_rate=0 (dropout is identity).
    y = lbad_forward(x, weight, bias, activ="relu")
    y = jax.block_until_ready(y)

    # Reference with matching MXU operand precision (bf16 inputs, f32 accum).
    ref = jnp.maximum(
        jnp.dot(x.astype(jnp.bfloat16), weight.astype(jnp.bfloat16).T,
                preferred_element_type=jnp.float32) + bias, 0.0)
    assert y.shape == ref.shape
    max_err = float(jnp.max(jnp.abs(y - ref)))
    assert jnp.allclose(y, ref, rtol=1e-2, atol=1e-2), max_err

    print("KERNEL_OK")
</pallas_src>

<mosaic_0001>
module attributes {stable_mosaic.version = 11 : i64} {
  func.func @_lbad_kernel(%arg0: i32, %arg1: i32, %arg2: i32, %arg3: memref<16x128xbf16, #tpu.memory_space<vmem>>, %arg4: memref<128x128xbf16, #tpu.memory_space<vmem>>, %arg5: memref<1x128xf32, #tpu.memory_space<vmem>>, %arg6: memref<1x128xf32, #tpu.memory_space<vmem>>, %arg7: memref<16x128xf32, #tpu.memory_space<vmem>>) attributes {dimension_semantics = [#tpu.dimension_semantics<parallel>, #tpu.dimension_semantics<parallel>, #tpu.dimension_semantics<arbitrary>], iteration_bounds = array<i64: 1, 1, 1>, scalar_prefetch = 0 : i64, scratch_operands = 0 : i64, tpu.core_type = #tpu.core_type<tc>, window_params = [{transform_indices = @transform_0, window_bounds = array<i64: 16, 128>}, {transform_indices = @transform_1, window_bounds = array<i64: 128, 128>}, {transform_indices = @transform_2, window_bounds = array<i64: 1, 128>}, {transform_indices = @transform_3, window_bounds = array<i64: 1, 128>}, {transform_indices = @transform_4, window_bounds = array<i64: 16, 128>}]} {
    %c0_i32 = arith.constant 0 : i32
    %0 = arith.cmpi eq, %arg2, %c0_i32 : i32
    %1 = arith.extui %0 : i1 to i32
    %c0_i32_0 = arith.constant 0 : i32
    %2 = arith.cmpi ne, %1, %c0_i32_0 : i32
    scf.if %2 {
      %cst_10 = arith.constant 0.000000e+00 : f32
      %12 = vector.broadcast %cst_10 : f32 to vector<16x128xf32>
      %c0_11 = arith.constant 0 : index
      %c0_12 = arith.constant 0 : index
      %13 = vector.load %arg7[%c0_11, %c0_12] : memref<16x128xf32, #tpu.memory_space<vmem>>, vector<16x128xf32>
      tpu.vector_store %arg7[%c0_11, %c0_12], %12 {strides = array<i32>} : memref<16x128xf32, #tpu.memory_space<vmem>>, vector<16x128xf32>,
    } else {
    }
    %c0 = arith.constant 0 : index
    %c0_1 = arith.constant 0 : index
    %3 = vector.load %arg7[%c0, %c0_1] : memref<16x128xf32, #tpu.memory_space<vmem>>, vector<16x128xf32>
    %c0_2 = arith.constant 0 : index
    %c0_3 = arith.constant 0 : index
    %4 = vector.load %arg3[%c0_2, %c0_3] : memref<16x128xbf16, #tpu.memory_space<vmem>>, vector<16x128xbf16>
    %c0_4 = arith.constant 0 : index
    %c0_5 = arith.constant 0 : index
    %5 = vector.load %arg4[%c0_4, %c0_5] : memref<128x128xbf16, #tpu.memory_space<vmem>>, vector<128x128xbf16>
    %cst = arith.constant dense<0.000000e+00> : vector<16x128xf32>
    %6 = tpu.matmul %4, %5, %cst {dimension_numbers = #tpu.dot_dimension_numbers<[1], [1], [0], [0], [0, 0, 1, 0], [], []>} : vector<16x128xbf16>, vector<128x128xbf16>, vector<16x128xf32> -> vector<16x128xf32>
    %7 = arith.addf %3, %6 : vector<16x128xf32>
    %c0_6 = arith.constant 0 : index
    %c0_7 = arith.constant 0 : index
    %8 = vector.load %arg7[%c0_6, %c0_7] : memref<16x128xf32, #tpu.memory_space<vmem>>, vector<16x128xf32>
    tpu.vector_store %arg7[%c0_6, %c0_7], %7 {strides = array<i32>} : memref<16x128xf32, #tpu.memory_space<vmem>>, vector<16x128xf32>,
    %c0_i32_8 = arith.constant 0 : i32
    %9 = arith.cmpi eq, %arg2, %c0_i32_8 : i32
    %10 = arith.extui %9 : i1 to i32
    %c0_i32_9 = arith.constant 0 : i32
    %11 = arith.cmpi ne, %10, %c0_i32_9 : i32
    scf.if %11 {
      %c0_10 = arith.constant 0 : index
      %c0_11 = arith.constant 0 : index
      %12 = vector.load %arg7[%c0_10, %c0_11] : memref<16x128xf32, #tpu.memory_space<vmem>>, vector<16x128xf32>
      %c0_12 = arith.constant 0 : index
      %c0_13 = arith.constant 0 : index
      %13 = vector.load %arg5[%c0_12, %c0_13] : memref<1x128xf32, #tpu.memory_space<vmem>>, vector<1x128xf32>
      %14 = vector.broadcast %13 : vector<1x128xf32> to vector<16x128xf32>
      %15 = arith.mulf %12, %14 : vector<16x128xf32>
      %c0_14 = arith.constant 0 : index
      %c0_15 = arith.constant 0 : index
      %16 = vector.load %arg6[%c0_14, %c0_15] : memref<1x128xf32, #tpu.memory_space<vmem>>, vector<1x128xf32>
      %17 = vector.broadcast %16 : vector<1x128xf32> to vector<16x128xf32>
      %18 = arith.addf %15, %17 : vector<16x128xf32>
      %cst_16 = arith.constant 0.000000e+00 : f32
      %19 = vector.broadcast %cst_16 : f32 to vector<16x128xf32>
      %20 = arith.maximumf %18, %19 : vector<16x128xf32>
      %c0_17 = arith.constant 0 : index
      %c0_18 = arith.constant 0 : index
      %21 = vector.load %arg7[%c0_17, %c0_18] : memref<16x128xf32, #tpu.memory_space<vmem>>, vector<16x128xf32>
      tpu.vector_store %arg7[%c0_17, %c0_18], %20 {strides = array<i32>} : memref<16x128xf32, #tpu.memory_space<vmem>>, vector<16x128xf32>,
    } else {
    }
    return
  }
  func.func @transform_0(%arg0: i32, %arg1: i32, %arg2: i32) -> (i32, i32) {
    %c0_i32 = arith.constant 0 : i32
    return %arg0, %arg2 : i32, i32
  }
  func.func @transform_1(%arg0: i32, %arg1: i32, %arg2: i32) -> (i32, i32) {
    %c0_i32 = arith.constant 0 : i32
    return %arg1, %arg2 : i32, i32
  }
  func.func @transform_2(%arg0: i32, %arg1: i32, %arg2: i32) -> (i32, i32) {
    %c0_i32 = arith.constant 0 : i32
    %c0_i32_0 = arith.constant 0 : i32
    return %c0_i32, %arg1 : i32, i32
  }
  func.func @transform_3(%arg0: i32, %arg1: i32, %arg2: i32) -> (i32, i32) {
    %c0_i32 = arith.constant 0 : i32
    %c0_i32_0 = arith.constant 0 : i32
    return %c0_i32, %arg1 : i32, i32
  }
  func.func @transform_4(%arg0: i32, %arg1: i32, %arg2: i32) -> (i32, i32) {
    %c0_i32 = arith.constant 0 : i32
    return %arg0, %arg1 : i32, i32
  }
}

</mosaic_0001>

<llo_original>
// kernel: tpu_custom_call.1
$region0: #{tpu_custom_call.1}
  #allocation0 [shape = 'u32[]', space=smem, size = 0x4, offset = 0x4, fixed_abs, tag = 'smem constant byte address 0x4 - core index']
  #allocation1 [shape = 'u32[144,128]{1,0:T(1,128)}', space=vmem, size = 0x12000, scoped, tag = 'internal scratch']
  %s0 = inlined_call_operand.hbm [shape: bf16[16,128], index: 0, kind: input, shape index: {}]
  %s1 = inlined_call_operand.hbm [shape: bf16[128,128], index: 1, kind: input, shape index: {}]
  %s2 = inlined_call_operand.vmem [shape: f32[1,128], index: 2, kind: input, shape index: {}]
  %s3 = inlined_call_operand.vmem [shape: f32[1,128], index: 3, kind: input, shape index: {}]
  %s4 = inlined_call_operand.hbm [shape: f32[16,128], index: 4, kind: output, shape index: {}]
  %s5 = sld [smem:[#allocation0]]
  $region42: #{tpu_custom_call.1} parent=0
    _
  %s7 = ssub.s32 1, %s5
  %s8 = scalar_select 0, %s7, %s5
  $region1: #{tpu_custom_call.1} parent=0
    #allocation2 [shape = 'u8[4096]{0}', space=vmem, size = 0x1000, scoped, tag = 'input window, operand 0, single buffered']
    #allocation3 [shape = 's32[1]{0}', space=sflag, size = 0x4, scoped, tag = 'scoped memory for tpu_custom_call.1']
    #allocation4 [shape = 's32[1]{0}', space=sflag, size = 0x4, scoped, tag = 'scoped memory for tpu_custom_call.1']
    #allocation5 [shape = 'u8[32768]{0}', space=vmem, size = 0x8000, scoped, tag = 'input window, operand 1, single buffered']
    #allocation6 [shape = 's32[1]{0}', space=sflag, size = 0x4, scoped, tag = 'scoped memory for tpu_custom_call.1']
    #allocation7 [shape = 'u8[8192]{0}', space=vmem, size = 0x2000, scoped, tag = 'output window, operand 0, single buffered']
    %9 = vsyncpa [#allocation3], 0
    %10 = vsyncpa [#allocation6], 0
    %11 = vsyncpa [#allocation4], 0
    // Predicated region
    $region2: #{tpu_custom_call.1} parent=1 // pred_check
      _
    $region3: #{tpu_custom_call.1} parent=1 // pred_check_branch
      %13 = sbr.rel (0) target = $region5
    $region4: #{tpu_custom_call.1} parent=1 // pred_region
      %s15 = ssub.s32 128, 128
      %16 = vsyncadd [#allocation3], %s15
      %s17 = sshll.u32 [#allocation2], 4
      %s18 = int_to_ptr.vmem [resolvable:$true] %s17
      %23 = dma.hbm_to_vmem [thread:$0]  %s0, 128, %s18, [#allocation3], 64, 64, 4
    $region5: #{tpu_custom_call.1} parent=1 // pred_fallthru
      _
    // Predicated region
    $region6: #{tpu_custom_call.1} parent=1 // pred_check
      _
    $region7: #{tpu_custom_call.1} parent=1 // pred_check_branch
      %25 = sbr.rel (0) target = $region9
    $region8: #{tpu_custom_call.1} parent=1 // pred_region
      %s27 = ssub.s32 1024, 1024
      %28 = vsyncadd [#allocation6], %s27
      %s29 = sshll.u32 [#allocation5], 4
      %s30 = int_to_ptr.vmem [resolvable:$true] %s29
      %35 = dma.hbm_to_vmem [thread:$0]  %s1, 1024, %s30, [#allocation6], 64, 64, 4
    $region9: #{tpu_custom_call.1} parent=1 // pred_fallthru
      _
    // Predicated region
    $region10: #{tpu_custom_call.1} parent=1 // pred_check
      _
    $region11: #{tpu_custom_call.1} parent=1 // pred_check_branch
      %37 = sbr.rel (0) target = $region13
    $region12: #{tpu_custom_call.1} parent=1 // pred_region
      _
    $region13: #{tpu_custom_call.1} parent=1 // pred_fallthru
      _
    // Predicated region
    $region14: #{tpu_custom_call.1} parent=1 // pred_check
      _
    $region15: #{tpu_custom_call.1} parent=1 // pred_check_branch
      %39 = sbr.rel (0) target = $region17
    $region16: #{tpu_custom_call.1} parent=1 // pred_region
      _
    $region17: #{tpu_custom_call.1} parent=1 // pred_fallthru
      _
    // Predicated region
    $region18: #{tpu_custom_call.1} parent=1 // pred_check
      _
    $region19: #{tpu_custom_call.1} parent=1 // pred_check_branch
      %41 = sbr.rel (0) target = $region21
    $region20: #{tpu_custom_call.1} parent=1 // pred_region
      %42 = dma.done [#allocation3], 128
    $region21: #{tpu_custom_call.1} parent=1 // pred_fallthru
      _
    // Predicated region
    $region22: #{tpu_custom_call.1} parent=1 // pred_check
      _
    $region23: #{tpu_custom_call.1} parent=1 // pred_check_branch
      %44 = sbr.rel (0) target = $region25
    $region24: #{tpu_custom_call.1} parent=1 // pred_region
      %45 = dma.done [#allocation6], 1024
    $region25: #{tpu_custom_call.1} parent=1 // pred_fallthru
      _
    %p47 = scmp.eq.s32.totalorder 0, 0
    // Predicated region
    $region26: #{tpu_custom_call.1} parent=1 // pred_check
      %p48 = pneg %p47
    $region27: #{tpu_custom_call.1} parent=1 // pred_check_branch
      %50 = sbr.rel (%p48) target = $region29
    $region28: #{tpu_custom_call.1} parent=1 // pred_region
      %51 = vst [vmem:[#allocation7] sm:$0xff] 0.0
      %52 = vst [vmem:[#allocation7 + $0x8] sm:$0xff] 0.0
    $region29: #{tpu_custom_call.1} parent=1 // pred_fallthru
      _
    %v53 = vld [vmem:[#allocation7] sm:$0xff]
    %v54 = vld [vmem:[#allocation7 + $0x8] sm:$0xff]
    %v55 = vld [vmem:[#allocation2] sm:$0xf]
    %v56 = vld [vmem:[#allocation2 + $0x4] sm:$0xf]
    %v57 = vld [vmem:[#allocation5] sm:$0xf]
    %v58 = vld [vmem:[#allocation5 + $0x4] sm:$0xf]
    %v59 = vld [vmem:[#allocation5 + $0x8] sm:$0xf]
    %v60 = vld [vmem:[#allocation5 + $0xc] sm:$0xf]
    %v61 = vld [vmem:[#allocation5 + $0x10] sm:$0xf]
    %v62 = vld [vmem:[#allocation5 + $0x14] sm:$0xf]
    %v63 = vld [vmem:[#allocation5 + $0x18] sm:$0xf]
    %v64 = vld [vmem:[#allocation5 + $0x1c] sm:$0xf]
    %v65 = vld [vmem:[#allocation5 + $0x20] sm:$0xf]
    %v66 = vld [vmem:[#allocation5 + $0x24] sm:$0xf]
    %v67 = vld [vmem:[#allocation5 + $0x28] sm:$0xf]
    %v68 = vld [vmem:[#allocation5 + $0x2c] sm:$0xf]
    %v69 = vld [vmem:[#allocation5 + $0x30] sm:$0xf]
    %v70 = vld [vmem:[#allocation5 + $0x34] sm:$0xf]
    %v71 = vld [vmem:[#allocation5 + $0x38] sm:$0xf]
    %v72 = vld [vmem:[#allocation5 + $0x3c] sm:$0xf]
    %v75 = vunpack.c.l.b16 %v55
    %v76 = vunpack.c.l.b16 %v56
    %v77 = vpack.c.b16 %v76, %v75
    %v95 = vunpack.c.l.b16 %v57
    %v96 = vunpack.c.l.b16 %v58
    %v97 = vunpack.c.l.b16 %v59
    %v98 = vunpack.c.l.b16 %v60
    %v99 = vunpack.c.l.b16 %v61
    %v100 = vunpack.c.l.b16 %v62
    %v101 = vunpack.c.l.b16 %v63
    %v102 = vunpack.c.l.b16 %v64
    %v103 = vunpack.c.l.b16 %v65
    %v104 = vunpack.c.l.b16 %v66
    %v105 = vunpack.c.l.b16 %v67
    %v106 = vunpack.c.l.b16 %v68
    %v107 = vunpack.c.l.b16 %v69
    %v108 = vunpack.c.l.b16 %v70
    %v109 = vunpack.c.l.b16 %v71
    %v110 = vunpack.c.l.b16 %v72
    %v111 = vpack.c.b16 %v96, %v95
    %v112 = vpack.c.b16 %v98, %v97
    %v113 = vpack.c.b16 %v100, %v99
    %v114 = vpack.c.b16 %v102, %v101
    %v115 = vpack.c.b16 %v104, %v103
    %v116 = vpack.c.b16 %v106, %v105
    %v117 = vpack.c.b16 %v108, %v107
    %v118 = vpack.c.b16 %v110, %v109
    %127 = vmatprep.subr.bf16.mxu0 0
    %128 = vmatpush1.bf16.xpose.msra.mxu0 %v111
    %129 = vmatprep.subr.bf16.mxu0 0
    %130 = vmatpush1.bf16.xpose.msra.mxu0 %v112
    %131 = vmatprep.subr.bf16.mxu0 0
    %132 = vmatpush1.bf16.xpose.msra.mxu0 %v113
    %133 = vmatprep.subr.bf16.mxu0 0
    %134 = vmatpush1.bf16.xpose.msra.mxu0 %v114
    %135 = vmatprep.subr.bf16.mxu0 0
    %136 = vmatpush1.bf16.xpose.msra.mxu0 %v115
    %137 = vmatprep.subr.bf16.mxu0 0
    %138 = vmatpush1.bf16.xpose.msra.mxu0 %v116
    %139 = vmatprep.subr.bf16.mxu0 0
    %140 = vmatpush1.bf16.xpose.msra.mxu0 %v117
    %141 = vmatprep.subr.bf16.mxu0 0
    %142 = vmatpush1.bf16.xpose.msra.mxu0 %v118
    %143 = vmatprep.subr.bf16.mxu0 0
    %144 = vmatpush1.bf16.xpose.msra.mxu0 0
    %145 = vmatprep.subr.bf16.mxu0 0
    %146 = vmatpush1.bf16.xpose.msra.mxu0 0
    %147 = vmatprep.subr.bf16.mxu0 0
    %148 = vmatpush1.bf16.xpose.msra.mxu0 0
    %149 = vmatprep.subr.bf16.mxu0 0
    %150 = vmatpush1.bf16.xpose.msra.mxu0 0
    %151 = vmatprep.subr.bf16.mxu0 0
    %152 = vmatpush1.bf16.xpose.msra.mxu0 0
    %153 = vmatprep.subr.bf16.mxu0 0
    %154 = vmatpush1.bf16.xpose.msra.mxu0 0
    %155 = vmatprep.subr.bf16.mxu0 0
    %156 = vmatpush1.bf16.xpose.msra.mxu0 0
    %157 = vmatprep.subr.bf16.mxu0 0
    %158 = vmatpush1.bf16.xpose.msra.mxu0 0
    %159 = vmatprep.mubr.bf16.mxu0 0
    %160 = vmatmul.mubr.bf16.gmra.mrb[0].mxu0 %v77
    %v161 = vpop.f32.mrb[0].mxu0
    %v162 = vadd.f32 0.0, %v161
    %v163 = vpop.f32.mrb[0].mxu0
    %v164 = vpop.f32.mrb[0].mxu0
    %v165 = vadd.f32 0.0, %v164
    %v166 = vpop.f32.mrb[0].mxu0
    %167 = vdwg.mxu0
    %v168 = vadd.f32 %v53, %v162
    %v169 = vadd.f32 %v54, %v165
    %170 = vst [vmem:[#allocation7] sm:$0xff] %v168
    %171 = vst [vmem:[#allocation7 + $0x8] sm:$0xff] %v169
    // Predicated region
    $region30: #{tpu_custom_call.1} parent=1 // pred_check
      %p172 = pneg %p47
    $region31: #{tpu_custom_call.1} parent=1 // pred_check_branch
      %174 = sbr.rel (%p172) target = $region33
    $region32: #{tpu_custom_call.1} parent=1 // pred_region
      %v175 = vld [vmem:[#allocation7] sm:$0xff]
      %v176 = vld [vmem:[#allocation7 + $0x8] sm:$0xff]
      %v177 = vld [vmem:[%s2] sm:$0x1]
      %v179 = vlaneseq
      %v180 = vshrl.u32 %v179, 7
      %v181 = vsub.s32 0, %v180
      %v182 = vrot.slane %v177, %v181
      %v184 = vmul.f32 %v175, %v182
      %v185 = vmul.f32 %v176, %v182
      %v186 = vld [vmem:[%s3] sm:$0x1]
      %v188 = vlaneseq
      %v189 = vshrl.u32 %v188, 7
      %v190 = vsub.s32 0, %v189
      %v191 = vrot.slane %v186, %v190
      %v193 = vadd.f32 %v184, %v191
      %v194 = vadd.f32 %v185, %v191
      %v195 = vmax.f32 %v193, 0.0
      %v196 = vmax.f32 %v194, 0.0
      %197 = vst [vmem:[#allocation7] sm:$0xff] %v195
      %198 = vst [vmem:[#allocation7 + $0x8] sm:$0xff] %v196
    $region33: #{tpu_custom_call.1} parent=1 // pred_fallthru
      _
    // Predicated region
    $region34: #{tpu_custom_call.1} parent=1 // pred_check
      _
    $region35: #{tpu_custom_call.1} parent=1 // pred_check_branch
      %200 = sbr.rel (0) target = $region37
    $region36: #{tpu_custom_call.1} parent=1 // pred_region
      %s202 = ssub.s32 256, 256
      %203 = vsyncadd [#allocation4], %s202
      %s204 = sshll.u32 [#allocation7], 4
      %s205 = int_to_ptr.vmem [resolvable:$true] %s204
      %210 = dma.vmem_to_hbm [thread:$0]  %s205, 256, %s4, [#allocation4], 128, 128, 8
    $region37: #{tpu_custom_call.1} parent=1 // pred_fallthru
      _
    // Predicated region
    $region38: #{tpu_custom_call.1} parent=1 // pred_check
      _
    $region39: #{tpu_custom_call.1} parent=1 // pred_check_branch
      %212 = sbr.rel (0) target = $region41
    $region40: #{tpu_custom_call.1} parent=1 // pred_region
      %213 = dma.done [#allocation4], 256
    $region41: #{tpu_custom_call.1} parent=1 // pred_fallthru
      _
    %214 = vsyncpa [#allocation3], 1
    %215 = vsyncpa [#allocation6], 1
    %216 = vsyncpa [#allocation4], 1

</llo_original>
